<compile_context>
chip_gen: v7x
topology: tpu7x:2x2x1
jax: 0.10.0
libtpu: 0.0.40
codegen_flags: <defaults>
</compile_context>

<pallas_src>
import functools

import numpy as np
import jax
import jax.numpy as jnp
from jax import lax
from jax.experimental import pallas as pl
from jax.experimental.pallas import tpu as pltpu

IGNORE_INDEX = -1
NUM_CLASS = 19
RATIO = 0.2

_MAX_HW_TILE = 32768          # lanes streamed per grid step (amortizes DMA / step overhead)
_LANE_CHUNK = 8192            # lanes processed per in-kernel pass (bounds VMEM temporaries)
_VMEM_LIMIT_BYTES = 40 * 1024 * 1024   # safe on v5e/v6e (128 MiB) and v7x (64 MiB/TC)


def _pick_hw_tile(hw, max_hw_tile, lane_chunk):
    """Pick the lane tile: whole HW if it fits, else the largest mask-free
    divisor (multiple of lane_chunk, then of 128), else max tile + masked tail."""
    if hw <= max_hw_tile:
        return hw
    for step in (lane_chunk, 128):
        t = (max_hw_tile // step) * step
        while t >= step:
            if hw % t == 0:
                return t
            t -= step
    return max_hw_tile


def _fused_kernel(prob_ref, out_ref, *, hw_total, hw_tile, lane_chunk,
                  needs_mask, ignore_index):
    """One pass over a (C, hw_tile) slab of one image.

    prob_ref : (1, C, hw_tile) block (input dtype; cast to f32 only for log path)
    out_ref  : (1, 1, C, 256)  fused partials, lane-broadcast:
               lanes 0..127 = argmax histogram counts, lanes 128..255 = sum p*log(p+1e-6)
    """
    C = prob_ref.shape[1]
    # (C,1) column iota; the lane axis is handled by in-register broadcasting
    # (avoids a full (C,T) int32 VMEM materialization).
    class_col = lax.broadcasted_iota(jnp.int32, (C, 1), 0)

    if needs_mask:
        tile_base = pl.program_id(0) * hw_tile

    counts_acc = jnp.zeros((C, 1), jnp.float32)
    s_acc = jnp.zeros((C, 1), jnp.float32)

    # Strip-mine the tile into static lane chunks so per-chunk temporaries stay
    # small regardless of hw_tile (keeps the 32K-lane tile viable on v7x).
    off = 0
    while off < hw_tile:
        w = min(lane_chunk, hw_tile - off)
        p = prob_ref[0, :, off:off + w]                       # (C, w), input dtype

        if needs_mask:  # only when no mask-free tile divides HW (rare fallback)
            lane = lax.broadcasted_iota(jnp.int32, (1, w), 1)
            valid = (tile_base + off + lane) < hw_total       # (1, w)
            p = jnp.where(valid, p, jnp.zeros((), p.dtype))

        # Channel-wise argmax with first-max tie-break (matches torch.max /
        # jnp.argmax).  Compare chain stays in the input dtype (bf16 VALU on
        # v6e/v7x); only the log path below is f32.
        maxpred = jnp.max(p, axis=0, keepdims=True)           # (1, w)
        argpred = jnp.min(jnp.where(p == maxpred, class_col, C),
                          axis=0, keepdims=True)              # (1, w) int32
        # Reference parity only: a softmax probability can never equal
        # ignore_index = -1, so this select never fires.  Kept so behaviour
        # tracks the PyTorch module exactly; do NOT "optimize" it away.
        argpred = jnp.where(maxpred != ignore_index, argpred, ignore_index)
        if needs_mask:
            argpred = jnp.where(valid, argpred, C)            # padded lanes: no class

        pf = p.astype(jnp.float32)
        ent = pf * jnp.log(pf + 1e-6)                         # padded lanes: 0*log(1e-6)=0

        # Exact in f32: every per-tile count <= hw_tile <= 2**15 << 2**24.
        counts_acc = counts_acc + jnp.sum(
            (argpred == class_col).astype(jnp.float32), axis=1, keepdims=True)
        s_acc = s_acc + jnp.sum(ent, axis=1, keepdims=True)
        off += w

    out_ref[0, 0, :, :128] = jnp.broadcast_to(counts_acc, (C, 128))
    out_ref[0, 0, :, 128:] = jnp.broadcast_to(s_acc, (C, 128))


def ent_prior_class_weights(pred, prob, label=None,
                            ignore_index=IGNORE_INDEX,
                            num_class=NUM_CLASS,
                            ratio=RATIO,
                            max_hw_tile=_MAX_HW_TILE,
                            lane_chunk=_LANE_CHUNK):
    """Pallas implementation of ENT_prior_class_weights.forward.

    pred:  (N, C, H, W)  unused by the forward pass (kept for API fidelity)
    prob:  (N, C, H, W)  probabilities (f32 or bf16)
    label: optional (N, H, W) integer labels for the histogram
    returns: scalar float32 loss
    """
    del pred  # unused by the reference forward
    N, C, H, W = prob.shape
    HW = H * W
    prob3 = prob.reshape(N, C, HW)        # metadata-only reshape, no dtype cast

    # f32 lane-sums of the histogram are exact only while a tile fits in 2**24.
    assert max_hw_tile <= (1 << 24), "max_hw_tile too large for exact f32 counts"
    lane_chunk = max(128, min(lane_chunk, max_hw_tile))

    hw_tile = _pick_hw_tile(HW, max_hw_tile, lane_chunk)
    n_tiles = -(-HW // hw_tile)
    needs_mask = (n_tiles * hw_tile != HW)

    kernel = functools.partial(_fused_kernel,
                               hw_total=HW, hw_tile=hw_tile,
                               lane_chunk=lane_chunk,
                               needs_mask=needs_mask,
                               ignore_index=ignore_index)

    part = pl.pallas_call(
        kernel,
        out_shape=jax.ShapeDtypeStruct((N, n_tiles, C, 256), jnp.float32),
        grid=(n_tiles, N),                # spatial-tile axis leads -> v7x megacore shards it
        in_specs=[pl.BlockSpec((1, C, hw_tile), lambda t, n: (n, 0, t))],
        out_specs=pl.BlockSpec((1, 1, C, 256), lambda t, n: (n, t, 0, 0)),
        compiler_params=pltpu.CompilerParams(
            dimension_semantics=("parallel", "parallel"),
            vmem_limit_bytes=_VMEM_LIMIT_BYTES),
    )(prob3)

    # per-class unweighted entropy sums, reduced over HW tiles (tiny (N,T,C) data)
    S = jnp.sum(part[:, :, :, 128], axis=1)                   # (N, C)

    if label is None:
        # per-tile counts are exact integers; sum across tiles in int32
        hist = jnp.sum(part[:, :, :, 0].astype(jnp.int32),
                       axis=1).astype(jnp.float32)            # (N, C)
    else:
        # label path: per-image histogram via segment_sum (no (N,C,HW) blow-up)
        def _one(lbl_flat):
            lbl = lbl_flat.astype(jnp.int32)
            valid = (lbl >= 0) & (lbl < num_class)
            idx = jnp.where(valid, lbl, num_class)
            h = jax.ops.segment_sum(valid.astype(jnp.float32), idx,
                                    num_segments=num_class + 1)
            return h[:num_class]
        hist = jax.vmap(_one)(label.reshape(N, -1))           # (N, C)

    # ---- per-image class weights (tiny; plain JAX glue, matches torch loop) ----
    total = jnp.sum(hist, axis=1, keepdims=True)              # (N, 1)
    weight = 1.0 / jnp.maximum(
        jnp.power(hist, ratio) * jnp.power(total, 1.0 - ratio), 1.0)
    w1 = 1.0 / jnp.power(total[:, 0], 1.0 - ratio)
    weight = weight.at[:, 1].set(
        jnp.where(hist[:, 1] == 0, w1, weight[:, 1]))         # (N, C)

    loss = (-jnp.sum(weight * S) / jnp.log(float(num_class))) / N
    return loss


def _reference(prob, label=None, num_class=NUM_CLASS, ratio=RATIO,
               ignore_index=IGNORE_INDEX):
    """Pure-JAX reference mirroring the PyTorch forward."""
    N, C, H, W = prob.shape
    maxpred = jnp.max(prob, axis=1)
    argpred = jnp.argmax(prob, axis=1)
    argpred = jnp.where(maxpred != ignore_index, argpred, ignore_index)
    lbl = argpred if label is None else label
    classes = jnp.arange(num_class)
    hist = jnp.sum(
        lbl.reshape(N, 1, -1) == classes.reshape(1, -1, 1),
        axis=-1).astype(jnp.float32)
    total = hist.sum(axis=1, keepdims=True)
    weight = 1.0 / jnp.maximum(hist ** ratio * total ** (1 - ratio), 1.0)
    w1 = 1.0 / (total[:, 0] ** (1 - ratio))
    weight = weight.at[:, 1].set(jnp.where(hist[:, 1] == 0, w1, weight[:, 1]))
    ent = prob * jnp.log(prob + 1e-6) * weight[:, :, None, None]
    ent_w = -jnp.sum(ent, axis=1) / jnp.log(float(num_class))
    return jnp.sum(ent_w, axis=(1, 2)).sum() / N


if __name__ == "__main__":
    key = jax.random.PRNGKey(0)
    N, C, H, W = 2, NUM_CLASS, 16, 16
    k1, k2, k3 = jax.random.split(key, 3)

    logits = jax.random.normal(k1, (N, C, H, W), dtype=jnp.float32)
    prob = jax.nn.softmax(logits, axis=1)                     # NCHW probabilities
    pred = logits                                             # unused by forward
    ref = jax.block_until_ready(_reference(prob))

    # 1) single-tile, single-chunk path (HW=256 fits one tile)
    loss = jax.block_until_ready(ent_prior_class_weights(pred, prob))
    np.testing.assert_allclose(np.asarray(loss), np.asarray(ref),
                               rtol=1e-4, atol=1e-5)

    # 2) multi-tile mask-free path (HW=256, tile=128 -> 2 tiles, divisor found)
    loss_t = jax.block_until_ready(
        ent_prior_class_weights(pred, prob, max_hw_tile=128))
    np.testing.assert_allclose(np.asarray(loss_t), np.asarray(ref),
                               rtol=1e-4, atol=1e-5)

    # 3) single-tile with in-kernel lane chunking (256 lanes, 128-lane chunks)
    loss_c = jax.block_until_ready(
        ent_prior_class_weights(pred, prob, lane_chunk=128))
    np.testing.assert_allclose(np.asarray(loss_c), np.asarray(ref),
                               rtol=1e-4, atol=1e-5)

    # 4) masked last tile + chunking (HW=300, tile=256 -> 2 tiles, overhang masked)
    logits2 = jax.random.normal(k2, (N, C, 10, 30), dtype=jnp.float32)
    prob2 = jax.nn.softmax(logits2, axis=1)
    ref_m = jax.block_until_ready(_reference(prob2))
    loss_m = jax.block_until_ready(
        ent_prior_class_weights(logits2, prob2, max_hw_tile=256, lane_chunk=128))
    np.testing.assert_allclose(np.asarray(loss_m), np.asarray(ref_m),
                               rtol=1e-4, atol=1e-5)

    # 5) bf16 probabilities (compare chain in bf16, log path in f32)
    prob_bf = prob.astype(jnp.bfloat16)
    loss_bf = jax.block_until_ready(ent_prior_class_weights(pred, prob_bf))
    ref_bf = jax.block_until_ready(_reference(prob_bf.astype(jnp.float32)))
    np.testing.assert_allclose(np.asarray(loss_bf), np.asarray(ref_bf),
                               rtol=1e-3, atol=1e-4)

    # 6) explicit label path (histogram from provided labels, incl. ignore_index)
    lbl = jax.random.randint(k3, (N, H, W), -1, NUM_CLASS, dtype=jnp.int32)
    loss_l = jax.block_until_ready(ent_prior_class_weights(pred, prob, label=lbl))
    ref_l = jax.block_until_ready(_reference(prob, label=lbl))
    np.testing.assert_allclose(np.asarray(loss_l), np.asarray(ref_l),
                               rtol=1e-4, atol=1e-5)

    print("KERNEL_OK")
</pallas_src>

<mosaic_0001>
module attributes {stable_mosaic.version = 11 : i64} {
  func.func @_fused_kernel(%arg0: i32, %arg1: i32, %arg2: memref<1x19x256xf32, #tpu.memory_space<vmem>>, %arg3: memref<1x1x19x256xf32, #tpu.memory_space<vmem>>) attributes {dimension_semantics = [#tpu.dimension_semantics<parallel>, #tpu.dimension_semantics<parallel>], iteration_bounds = array<i64: 1, 2>, scalar_prefetch = 0 : i64, scratch_operands = 0 : i64, tpu.core_type = #tpu.core_type<tc>, window_params = [{transform_indices = @transform_0, window_bounds = array<i64: 1, 19, 256>}, {transform_indices = @transform_1, window_bounds = array<i64: 1, 1, 19, 256>}]} {
    %0 = tpu.iota {dimensions = array<i32: 0>} : vector<19x1xi32>
    %cst = arith.constant 0.000000e+00 : f32
    %1 = vector.broadcast %cst : f32 to vector<19x1xf32>
    %cst_0 = arith.constant 0.000000e+00 : f32
    %2 = vector.broadcast %cst_0 : f32 to vector<19x1xf32>
    %c0 = arith.constant 0 : index
    %c0_1 = arith.constant 0 : index
    %c0_2 = arith.constant 0 : index
    %3 = vector.load %arg2[%c0, %c0_1, %c0_2] : memref<1x19x256xf32, #tpu.memory_space<vmem>>, vector<1x19x256xf32>
    %4 = vector.shape_cast %3 : vector<1x19x256xf32> to vector<19x256xf32>
    %cst_3 = arith.constant dense<0xFF800000> : vector<256xf32>
    %5 = vector.multi_reduction <maximumf>, %4, %cst_3 [0] : vector<19x256xf32> to vector<256xf32>
    %6 = vector.shape_cast %5 : vector<256xf32> to vector<1x256xf32>
    %7 = vector.broadcast %6 : vector<1x256xf32> to vector<19x256xf32>
    %8 = arith.cmpf oeq, %4, %7 : vector<19x256xf32>
    %c19_i32 = arith.constant 19 : i32
    %9 = vector.shape_cast %0 : vector<19x1xi32> to vector<19x1xi32>
    %10 = vector.broadcast %9 : vector<19x1xi32> to vector<19x256xi32>
    %11 = vector.broadcast %c19_i32 : i32 to vector<19x256xi32>
    %12 = arith.select %8, %10, %11 : vector<19x256xi1>, vector<19x256xi32>
    %cst_4 = arith.constant dense<2147483647> : vector<256xi32>
    %13 = vector.multi_reduction <minsi>, %12, %cst_4 [0] : vector<19x256xi32> to vector<256xi32>
    %14 = vector.shape_cast %13 : vector<256xi32> to vector<1x256xi32>
    %cst_5 = arith.constant -1.000000e+00 : f32
    %15 = vector.broadcast %cst_5 : f32 to vector<1x256xf32>
    %16 = arith.cmpf one, %6, %15 : vector<1x256xf32>
    %c-1_i32 = arith.constant -1 : i32
    %17 = vector.broadcast %c-1_i32 : i32 to vector<1x256xi32>
    %18 = arith.select %16, %14, %17 : vector<1x256xi1>, vector<1x256xi32>
    %cst_6 = arith.constant 9.99999997E-7 : f32
    %19 = vector.broadcast %cst_6 : f32 to vector<19x256xf32>
    %20 = arith.addf %4, %19 : vector<19x256xf32>
    %21 = math.log %20 : vector<19x256xf32>
    %22 = arith.mulf %4, %21 : vector<19x256xf32>
    %23 = vector.broadcast %18 : vector<1x256xi32> to vector<19x256xi32>
    %24 = vector.broadcast %0 : vector<19x1xi32> to vector<19x256xi32>
    %25 = arith.cmpi eq, %23, %24 : vector<19x256xi32>
    %26 = arith.extui %25 : vector<19x256xi1> to vector<19x256xi32>
    %27 = arith.sitofp %26 : vector<19x256xi32> to vector<19x256xf32>
    %cst_7 = arith.constant dense<0.000000e+00> : vector<19xf32>
    %28 = vector.multi_reduction <add>, %27, %cst_7 [1] : vector<19x256xf32> to vector<19xf32>
    %29 = vector.shape_cast %28 : vector<19xf32> to vector<19x1xf32>
    %30 = arith.addf %1, %29 : vector<19x1xf32>
    %cst_8 = arith.constant dense<0.000000e+00> : vector<19xf32>
    %31 = vector.multi_reduction <add>, %22, %cst_8 [1] : vector<19x256xf32> to vector<19xf32>
    %32 = vector.shape_cast %31 : vector<19xf32> to vector<19x1xf32>
    %33 = arith.addf %2, %32 : vector<19x1xf32>
    %34 = vector.shape_cast %30 : vector<19x1xf32> to vector<19x1xf32>
    %35 = vector.broadcast %34 : vector<19x1xf32> to vector<19x128xf32>
    %c0_9 = arith.constant 0 : index
    %c0_10 = arith.constant 0 : index
    %c0_11 = arith.constant 0 : index
    %c0_12 = arith.constant 0 : index
    %36 = vector.load %arg3[%c0_9, %c0_10, %c0_11, %c0_12] : memref<1x1x19x256xf32, #tpu.memory_space<vmem>>, vector<1x1x19x128xf32>
    %37 = vector.shape_cast %36 : vector<1x1x19x128xf32> to vector<19x128xf32>
    %38 = vector.shape_cast %35 : vector<19x128xf32> to vector<1x1x19x128xf32>
    tpu.vector_store %arg3[%c0_9, %c0_10, %c0_11, %c0_12], %38 {strides = array<i32>} : memref<1x1x19x256xf32, #tpu.memory_space<vmem>>, vector<1x1x19x128xf32>,
    %39 = vector.shape_cast %33 : vector<19x1xf32> to vector<19x1xf32>
    %40 = vector.broadcast %39 : vector<19x1xf32> to vector<19x128xf32>
    %c0_13 = arith.constant 0 : index
    %c0_14 = arith.constant 0 : index
    %c0_15 = arith.constant 0 : index
    %c128 = arith.constant 128 : index
    %41 = vector.load %arg3[%c0_13, %c0_14, %c0_15, %c128] : memref<1x1x19x256xf32, #tpu.memory_space<vmem>>, vector<1x1x19x128xf32>
    %42 = vector.shape_cast %41 : vector<1x1x19x128xf32> to vector<19x128xf32>
    %43 = vector.shape_cast %40 : vector<19x128xf32> to vector<1x1x19x128xf32>
    tpu.vector_store %arg3[%c0_13, %c0_14, %c0_15, %c128], %43 {strides = array<i32>} : memref<1x1x19x256xf32, #tpu.memory_space<vmem>>, vector<1x1x19x128xf32>,
    return
  }
  func.func @transform_0(%arg0: i32, %arg1: i32) -> (i32, i32, i32) {
    %c0_i32 = arith.constant 0 : i32
    %c0_i32_0 = arith.constant 0 : i32
    return %arg1, %c0_i32, %arg0 : i32, i32, i32
  }
  func.func @transform_1(%arg0: i32, %arg1: i32) -> (i32, i32, i32, i32) {
    %c0_i32 = arith.constant 0 : i32
    %c0_i32_0 = arith.constant 0 : i32
    %c0_i32_1 = arith.constant 0 : i32
    return %arg1, %arg0, %c0_i32, %c0_i32_0 : i32, i32, i32, i32
  }
}

</mosaic_0001>

<llo_original>
// kernel: tpu_custom_call.1
$region0: #{tpu_custom_call.1}
  #allocation0 [shape = 'u32[]', space=smem, size = 0x4, offset = 0x4, fixed_abs, tag = 'smem constant byte address 0x4 - core index']
  #allocation1 [shape = 'u32[144,128]{1,0:T(1,128)}', space=vmem, size = 0x12000, scoped, tag = 'internal scratch']
  %s0 = inlined_call_operand.vmem [shape: f32[2,19,256], index: 0, kind: input, shape index: {}]
  %s1 = inlined_call_operand.vmem [shape: f32[2,1,19,256], index: 1, kind: output, shape index: {}]
  %s2 = sld [smem:[#allocation0]]
  $region37: #{tpu_custom_call.1} parent=0
    _
  %s4 = ssub.s32 1, %s2
  %s5 = scalar_select 0, %s4, %s2
  loop: start=0, step=1, limit=4
  $region2: #{tpu_custom_call.1} parent=0 // loop_pre_header
    _
  $region3: #{tpu_custom_call.1} parent=0 // loop_header
    %s7 = sphi 0, %s11
    %p8 = scmp.ge.s32.totalorder %s7, 4
    %s14 = sphi 0, %s26
    %s15 = sphi 0, %s22
    %s16 = sphi 0, %s14
    %s17 = sphi 0, %s15
    %s18 = sphi 0, %s16
    %s19 = sphi 0, %s17
    %s31 = sphi 0, %s33
    %s34 = sphi 0, %s31
    %s35 = sphi 0, %s34
    %s51 = sphi 0, %s35
    %s59 = sphi 0, %s61
    %s62 = sphi 0, %s59
    %s63 = sphi 0, %s62
    %s79 = sphi 0, %s63
  $region4: #{tpu_custom_call.1} parent=0 // loop_header_branch
    %10 = sbr.rel (%p8) target = $region8
  $region5: #{tpu_custom_call.1} parent=0 // loop_body
    %s12 = ssub.s32 %s7, 1
    %s13 = ssub.s32 %s7, 2
    %s20 = sadd.s32 1, %s15
    %p21 = scmp.ge.s32.totalorder %s20, 2
    %s22 = scalar_select %p21, 0, %s20
    %s23 = sadd.s32 1, %s14
    %s24 = scalar_select %p21, %s23, %s14
    %p25 = scmp.ge.s32.totalorder %s24, 1
    %s26 = scalar_select %p25, 0, %s24
    %s27 = ssub.s32 %s15, %s22
    %s28 = ssub.s32 %s14, %s26
    %s29 = sor.u32 %s27, %s28
    %p30 = scmp.eq.s32.totalorder %s29, 0
    %s32 = sadd.s32 %s31, 1
    %s33 = scalar_select %p30, %s31, %s32
    %p36 = pneg %p30
    %p37 = scmp.eq.s32.totalorder %s7, 1
    %p38 = por %p36, %p37
    %p39 = scmp.ne.s32.totalorder %s31, %s34
    %p40 = scmp.eq.s32.totalorder %s7, 0
    %p41 = por %p39, %p40
    %p42 = scmp.ne.s32.totalorder %s31, %s34
    %p43 = scmp.eq.s32.totalorder %s12, 1
    %p44 = por %p42, %p43
    %p45 = scmp.ne.s32.totalorder %s34, %s35
    %p46 = scmp.eq.s32.totalorder %s12, 0
    %p47 = por %p45, %p46
    %p48 = scmp.ne.s32.totalorder %s34, %s35
    %p49 = scmp.eq.s32.totalorder %s13, 1
    %p50 = por %p48, %p49
    %p52 = scmp.ne.s32.totalorder %s35, %s51
    %p53 = scmp.eq.s32.totalorder %s13, 0
    %p54 = por %p52, %p53
    %s55 = ssub.s32 %s15, %s22
    %s56 = ssub.s32 %s14, %s26
    %s57 = sor.u32 %s55, %s56
    %p58 = scmp.eq.s32.totalorder %s57, 0
    %s60 = sadd.s32 %s59, 1
    %s61 = scalar_select %p58, %s59, %s60
    %p64 = pneg %p58
    %p65 = scmp.eq.s32.totalorder %s7, 1
    %p66 = por %p64, %p65
    %p67 = scmp.ne.s32.totalorder %s59, %s62
    %p68 = scmp.eq.s32.totalorder %s7, 0
    %p69 = por %p67, %p68
    %p70 = scmp.ne.s32.totalorder %s59, %s62
    %p71 = scmp.eq.s32.totalorder %s12, 1
    %p72 = por %p70, %p71
    %p73 = scmp.ne.s32.totalorder %s62, %s63
    %p74 = scmp.eq.s32.totalorder %s12, 0
    %p75 = por %p73, %p74
    %p76 = scmp.ne.s32.totalorder %s62, %s63
    %p77 = scmp.eq.s32.totalorder %s13, 1
    %p78 = por %p76, %p77
    %p80 = scmp.ne.s32.totalorder %s63, %s79
    %p81 = scmp.eq.s32.totalorder %s13, 0
    %p82 = por %p80, %p81
    %p83 = scmp.le.s32.totalorder 1, %s7
    %p84 = scmp.lt.s32.totalorder %s7, 3
    %p85 = pnand %p83, %p84
    %p86 = pneg %p85
    // Predicated region
    $region9: #{tpu_custom_call.1} parent=5 // pred_check
      _
    $region10: #{tpu_custom_call.1} parent=5 // pred_check_branch
      %88 = sbr.rel (%p85) target = $region12
    $region11: #{tpu_custom_call.1} parent=5 // pred_region
      %s89 = ssub.s32 %s7, 1
    $region12: #{tpu_custom_call.1} parent=5 // pred_fallthru
      _
    %p90 = scmp.lt.s32.totalorder %s7, 2
    // Predicated region
    $region13: #{tpu_custom_call.1} parent=5 // pred_check
      %p91 = pneg %p90
    $region14: #{tpu_custom_call.1} parent=5 // pred_check_branch
      %93 = sbr.rel (%p91) target = $region16
    $region15: #{tpu_custom_call.1} parent=5 // pred_region
      // Predicated region
      $region17: #{tpu_custom_call.1} parent=15 // pred_check
        %p94 = pneg %p41
      $region18: #{tpu_custom_call.1} parent=15 // pred_check_branch
        %96 = sbr.rel (%p94) target = $region20
      $region19: #{tpu_custom_call.1} parent=15 // pred_region
        %s97 = smul.u32 2, %s14
        %p98 = scmp.lt.s32.totalorder %s15, 1
        %s99 = scalar_select %p98, %s15, 1
        %p100 = scmp.lt.s32.totalorder %s97, 1
        %s101 = scalar_select %p100, %s97, 1
        %s102 = smul.addr %s99, 6
        %s103 = sadd.s32 %s101, %s102
        %s104 = smul.addr %s103, 8
        %s105 = scalar_lea.vmem %s0, %s104
        %s106 = smul.u32 2, %s14
      $region20: #{tpu_custom_call.1} parent=15 // pred_fallthru
        _
    $region16: #{tpu_custom_call.1} parent=5 // pred_fallthru
      _
    %p107 = scmp.le.s32.totalorder 1, %s7
    %p108 = scmp.lt.s32.totalorder %s7, 3
    %p109 = pnand %p107, %p108
    %p110 = pneg %p109
    // Predicated region
    $region21: #{tpu_custom_call.1} parent=5 // pred_check
      _
    $region22: #{tpu_custom_call.1} parent=5 // pred_check_branch
      %112 = sbr.rel (%p109) target = $region24
    $region23: #{tpu_custom_call.1} parent=5 // pred_region
      %s113 = ssub.s32 %s7, 1
      %s114 = smul.u32 2, %s16
      %p115 = scmp.lt.s32.totalorder %s17, 1
      %s116 = scalar_select %p115, %s17, 1
      %p117 = scmp.lt.s32.totalorder %s114, 1
      %s118 = scalar_select %p117, %s114, 1
      %s119 = smul.addr %s116, 6
      %s120 = sadd.s32 %s118, %s119
      %s121 = smul.addr %s120, 8
      %s122 = scalar_lea.vmem %s0, %s121
      %p123 = pneg %p47
      %p124 = pneg %p44
      %p125 = pneg %p75
      %p126 = pneg %p72
      %p127 = scmp.lt.s32.totalorder %s17, 1
      %s128 = scalar_select %p127, %s17, 1
      %p129 = scmp.lt.s32.totalorder %s16, 0
      %s130 = scalar_select %p129, %s16, 0
      %s131 = smul.addr %s130, 6
      %s132 = smul.addr %s128, 6
      %s133 = sadd.s32 %s131, %s132
      %s134 = smul.addr %s133, 8
      %s135 = scalar_lea.vmem %s1, %s134
      %s136 = smul.u32 2, %s16
      %p137 = scmp.lt.s32.totalorder %s17, 1
      %s138 = scalar_select %p137, %s17, 1
      %p139 = scmp.lt.s32.totalorder %s136, 1
      %s140 = scalar_select %p139, %s136, 1
      %s141 = smul.addr %s138, 6
      %s142 = sadd.s32 %s140, %s141
      %s143 = smul.addr %s142, 8
      %s144 = scalar_lea.vmem %s0, %s143
      %s145 = smul.u32 2, %s16
      %p146 = scmp.lt.s32.totalorder %s17, 1
      %s147 = scalar_select %p146, %s17, 1
      %p148 = scmp.lt.s32.totalorder %s16, 0
      %s149 = scalar_select %p148, %s16, 0
      %s150 = smul.addr %s149, 6
      %s151 = smul.addr %s147, 6
      %s152 = sadd.s32 %s150, %s151
      %s153 = smul.addr %s152, 8
      %s154 = scalar_lea.vmem %s1, %s153
      %v155 = vlaneseq
      %v156 = vshrl.u32 %v155, 7
      %v157 = vadd.s32 %v156, 8
      %v158 = vadd.s32 %v156, 16
      %v159 = vld [vmem:[%s144] sm:$0xff]
      %v160 = vld [vmem:[%s144 + $0x8] sm:$0xff]
      %v161 = vld [vmem:[%s144 + $0x10] sm:$0xff]
      %v162 = vld [vmem:[%s144 + $0x18] sm:$0xff]
      %v163 = vld [vmem:[%s144 + $0x20] sm:$0x7]
      %v164 = vld [vmem:[%s144 + $0x28] sm:$0x7]
      %vm165 = vcmask 1042432
      %v166 = vsel %vm165, %v163, -inf
      %v167 = vmax.f32 %v159, %v166
      %v168 = vmax.f32 %v167, %v161
      %v169 = vrot.slane %v168, 4
      %v170 = vmax.f32 %v168, %v169
      %v171 = vrot.slane %v170, 2
      %v172 = vmax.f32 %v170, %v171
      %v173 = vrot.slane %v172, 1
      %v174 = vmax.f32 %v172, %v173
      %v175 = vsel %vm165, %v164, -inf
      %v176 = vmax.f32 %v160, %v175
      %v177 = vmax.f32 %v176, %v162
      %v178 = vrot.slane %v177, 4
      %v179 = vmax.f32 %v177, %v178
      %v180 = vrot.slane %v179, 2
      %v181 = vmax.f32 %v179, %v180
      %v182 = vrot.slane %v181, 1
      %v183 = vmax.f32 %v181, %v182
      %vm184 = vcmp.eq.f32.partialorder %v159, %v174
      %vm185 = vcmp.eq.f32.partialorder %v160, %v183
      %vm186 = vcmp.eq.f32.partialorder %v161, %v174
      %vm187 = vcmp.eq.f32.partialorder %v162, %v183
      %vm188 = vcmp.eq.f32.partialorder %v163, %v174
      %vm189 = vcmp.eq.f32.partialorder %v164, %v183
      %v190 = vsel %vm184, %v156, 19
      %v191 = vsel %vm185, %v156, 19
      %v192 = vsel %vm186, %v157, 19
      %v193 = vsel %vm187, %v157, 19
      %v194 = vsel %vm188, %v158, 19
      %v195 = vsel %vm189, %v158, 19
      %v196 = vsel %vm165, %v194, 2147483647
      %vm197 = vcmp.lt.s32.totalorder %v190, %v196
      %v198 = vsel %vm197, %v190, %v196
      %vm199 = vcmp.lt.s32.totalorder %v198, %v192
      %v200 = vsel %vm199, %v198, %v192
      %v201 = vrot.slane %v200, 4
      %vm202 = vcmp.lt.s32.totalorder %v200, %v201
      %v203 = vsel %vm202, %v200, %v201
      %v204 = vrot.slane %v203, 2
      %vm205 = vcmp.lt.s32.totalorder %v203, %v204
      %v206 = vsel %vm205, %v203, %v204
      %v207 = vrot.slane %v206, 1
      %vm208 = vcmp.lt.s32.totalorder %v206, %v207
      %v209 = vsel %vm208, %v206, %v207
      %v210 = vsel %vm165, %v195, 2147483647
      %vm211 = vcmp.lt.s32.totalorder %v191, %v210
      %v212 = vsel %vm211, %v191, %v210
      %vm213 = vcmp.lt.s32.totalorder %v212, %v193
      %v214 = vsel %vm213, %v212, %v193
      %v215 = vrot.slane %v214, 4
      %vm216 = vcmp.lt.s32.totalorder %v214, %v215
      %v217 = vsel %vm216, %v214, %v215
      %v218 = vrot.slane %v217, 2
      %vm219 = vcmp.lt.s32.totalorder %v217, %v218
      %v220 = vsel %vm219, %v217, %v218
      %v221 = vrot.slane %v220, 1
      %vm222 = vcmp.lt.s32.totalorder %v220, %v221
      %v223 = vsel %vm222, %v220, %v221
      %vm224 = vcmp.ne.f32.partialorder %v174, -1.0
      %vm225 = vcmp.ne.f32.partialorder %v183, -1.0
      %v226 = vsel %vm224, %v209, 4294967295
      %v227 = vsel %vm225, %v223, 4294967295
      %v228 = vadd.f32 %v159, 1e-06
      %v229 = vadd.f32 %v160, 1e-06
      %v230 = vadd.f32 %v161, 1e-06
      %v231 = vadd.f32 %v162, 1e-06
      %v232 = vadd.f32 %v163, 1e-06
      %v233 = vadd.f32 %v164, 1e-06
      %v234 = vlog2.pop %v228
      %v235 = vmul.f32 %v234, 0.6931472
      %v236 = vlog2.pop %v229
      %v237 = vmul.f32 %v236, 0.6931472
      %v238 = vlog2.pop %v230
      %v239 = vmul.f32 %v238, 0.6931472
      %v240 = vlog2.pop %v231
      %v241 = vmul.f32 %v240, 0.6931472
      %v242 = vlog2.pop %v232
      %v243 = vmul.f32 %v242, 0.6931472
      %v244 = vlog2.pop %v233
      %v245 = vmul.f32 %v244, 0.6931472
      %v246 = vmul.f32 %v159, %v235
      %v247 = vmul.f32 %v160, %v237
      %v248 = vmul.f32 %v161, %v239
      %v249 = vmul.f32 %v162, %v241
      %v250 = vmul.f32 %v163, %v243
      %v251 = vmul.f32 %v164, %v245
      %vm252 = vcmp.eq.s32.totalorder %v226, %v156
      %vm253 = vcmp.eq.s32.totalorder %v227, %v156
      %vm254 = vcmp.eq.s32.totalorder %v226, %v157
      %vm255 = vcmp.eq.s32.totalorder %v227, %v157
      %vm256 = vcmp.eq.s32.totalorder %v226, %v158
      %vm257 = vcmp.eq.s32.totalorder %v227, %v158
      %v258 = vsel %vm252, 1, 0
      %v259 = vsel %vm253, 1, 0
      %v260 = vsel %vm254, 1, 0
      %v261 = vsel %vm255, 1, 0
      %v262 = vsel %vm256, 1, 0
      %v263 = vsel %vm257, 1, 0
      %v264 = vcvt.s32.f32 %v258
      %v265 = vcvt.s32.f32 %v259
      %v266 = vcvt.s32.f32 %v260
      %v267 = vcvt.s32.f32 %v261
      %v268 = vcvt.s32.f32 %v262
      %v269 = vcvt.s32.f32 %v263
      %v270 = vadd.f32 %v264, %v265
      %271 = vadd.xlane.f32.xlu0 %v270
      %v272 = vpop.xlane.xlu0 %271
      %v273 = vadd.f32 %v266, %v267
      %274 = vadd.xlane.f32.xlu0 %v273
      %v275 = vpop.xlane.xlu0 %274
      %v276 = vsel %vm165, %v268, 0.0
      %v277 = vsel %vm165, %v269, 0.0
      %v278 = vadd.f32 %v276, %v277
      %279 = vadd.xlane.f32.xlu0 %v278
      %v280 = vpop.xlane.xlu0 %279
      %v281 = vadd.f32 %v272, 0.0
      %v282 = vadd.f32 %v275, 0.0
      %v283 = vadd.f32 %v280, 0.0
      %v284 = vadd.f32 %v246, %v247
      %285 = vadd.xlane.f32.xlu0 %v284
      %v286 = vpop.xlane.xlu0 %285
      %v287 = vadd.f32 %v248, %v249
      %288 = vadd.xlane.f32.xlu0 %v287
      %v289 = vpop.xlane.xlu0 %288
      %v290 = vsel %vm165, %v250, 0.0
      %v291 = vsel %vm165, %v251, 0.0
      %v292 = vadd.f32 %v290, %v291
      %293 = vadd.xlane.f32.xlu0 %v292
      %v294 = vpop.xlane.xlu0 %293
      %v295 = vadd.f32 %v286, 0.0
      %v296 = vadd.f32 %v289, 0.0
      %v297 = vadd.f32 %v294, 0.0
      %298 = vst [vmem:[%s154] sm:$0xff] %v281
      %299 = vst [vmem:[%s154 + $0x10] sm:$0xff] %v282
      %300 = vst [vmem:[%s154 + $0x20] sm:$0x7] %v283
      %301 = vst [vmem:[%s154 + $0x8] sm:$0xff] %v295
      %302 = vst [vmem:[%s154 + $0x18] sm:$0xff] %v296
      %303 = vst [vmem:[%s154 + $0x28] sm:$0x7] %v297
      %p304 = scmp.lt.s32.totalorder %s17, 1
      %s305 = scalar_select %p304, %s17, 1
      %p306 = scmp.lt.s32.totalorder %s16, 0
      %s307 = scalar_select %p306, %s16, 0
      %s308 = smul.addr %s307, 6
      %s309 = smul.addr %s305, 6
      %s310 = sadd.s32 %s308, %s309
      %s311 = smul.addr %s310, 8
      %s312 = scalar_lea.vmem %s1, %s311
      // Predicated region
      $region25: #{tpu_custom_call.1} parent=23 // pred_check
        %p313 = pneg %p72
      $region26: #{tpu_custom_call.1} parent=23 // pred_check_branch
        %315 = sbr.rel (%p313) target = $region28
      $region27: #{tpu_custom_call.1} parent=23 // pred_region
        _
      $region28: #{tpu_custom_call.1} parent=23 // pred_fallthru
        _
    $region24: #{tpu_custom_call.1} parent=5 // pred_fallthru
      _
    %p316 = scmp.le.s32.totalorder 2, %s7
    // Predicated region
    $region29: #{tpu_custom_call.1} parent=5 // pred_check
      %p317 = pneg %p316
    $region30: #{tpu_custom_call.1} parent=5 // pred_check_branch
      %319 = sbr.rel (%p317) target = $region32
    $region31: #{tpu_custom_call.1} parent=5 // pred_region
      %s320 = ssub.s32 %s7, 2
      // Predicated region
      $region33: #{tpu_custom_call.1} parent=31 // pred_check
        %p321 = pneg %p78
      $region34: #{tpu_custom_call.1} parent=31 // pred_check_branch
        %323 = sbr.rel (%p321) target = $region36
      $region35: #{tpu_custom_call.1} parent=31 // pred_region
        %p324 = scmp.lt.s32.totalorder %s19, 1
        %s325 = scalar_select %p324, %s19, 1
        %p326 = scmp.lt.s32.totalorder %s18, 0
        %s327 = scalar_select %p326, %s18, 0
        %s328 = smul.addr %s327, 6
        %s329 = smul.addr %s325, 6
        %s330 = sadd.s32 %s328, %s329
        %s331 = smul.addr %s330, 8
        %s332 = scalar_lea.vmem %s1, %s331
      $region36: #{tpu_custom_call.1} parent=31 // pred_fallthru
        _
    $region32: #{tpu_custom_call.1} parent=5 // pred_fallthru
      _
  $region6: #{tpu_custom_call.1} parent=0 // loop_footer
    %s11 = sadd.s32 1, %s7
  $region7: #{tpu_custom_call.1} parent=0 // loop_footer_branch
    %6 = sbr.rel target = $region3
  $region8: #{tpu_custom_call.1} parent=0 // loop_exit
    _

</llo_original>
